<compile_context>
chip_gen: v7x
topology: tpu7x:2x2x1
jax: 0.10.0
libtpu: 0.0.40
codegen_flags: <defaults>
</compile_context>

<pallas_src>
import functools

import jax
import jax.numpy as jnp
from jax.experimental import pallas as pl
from jax.experimental.pallas import tpu as pltpu


# ---------------------------------------------------------------------------
# Kernels
# ---------------------------------------------------------------------------
def _mlp_tail(e2d, tb, seq_len, w1_ref, b1_ref, w2_ref, b2_ref, out_ref):
    # e2d: (tb*seq_len, Dp) bf16.  One large MXU matmul with f32 accumulation.
    hdim = w1_ref.shape[1]
    h = jnp.dot(e2d, w1_ref[...], preferred_element_type=jnp.float32)
    # Bias + ReLU in f32 (padded H columns have zero weights/bias -> stay zero).
    h = jnp.maximum(h + b1_ref[...], 0.0)
    # Max over time (PyTorch dim=1) -> (tb, Hp).
    pooled = jnp.max(h.reshape(tb, seq_len, hdim), axis=1)
    # Output linear: (tb, Hp) x (Hp, Cp) -> (tb, Cp).  Padded rows/cols are zero.
    out = jnp.dot(pooled, w2_ref[...], preferred_element_type=jnp.float32) + b2_ref[...]
    out_ref[...] = out.astype(out_ref.dtype)


def seq_mlp_fused_kernel(ids_ref, tbl_ref, w1_ref, b1_ref, w2_ref, b2_ref, out_ref):
    # ids_ref: (tb, T) int32   tbl_ref: (Vp, Dp) bf16 (VMEM-resident across the grid)
    tb, seq_len = ids_ref.shape
    ids = ids_ref[...].reshape(tb * seq_len)
    e2d = jnp.take(tbl_ref[...], ids, axis=0, mode="promise_in_bounds")  # (tb*T, Dp) bf16
    _mlp_tail(e2d, tb, seq_len, w1_ref, b1_ref, w2_ref, b2_ref, out_ref)


def seq_mlp_kernel(emb_ref, w1_ref, b1_ref, w2_ref, b2_ref, out_ref, *, seq_len):
    # emb_ref: (tb*T, Dp) bf16 -- already flat, fed straight into the MXU LHS.
    tb = emb_ref.shape[0] // seq_len
    _mlp_tail(emb_ref[...], tb, seq_len, w1_ref, b1_ref, w2_ref, b2_ref, out_ref)


# ---------------------------------------------------------------------------
# Capability probe: can Mosaic lower an in-kernel embedding-row gather?
# ---------------------------------------------------------------------------
@functools.lru_cache(maxsize=None)
def _in_kernel_gather_supported():
    def probe_kernel(ids_ref, tbl_ref, o_ref):
        n = ids_ref.shape[0] * ids_ref.shape[1]
        ids = ids_ref[...].reshape(n)
        o_ref[...] = jnp.take(tbl_ref[...], ids, axis=0, mode="promise_in_bounds")

    try:
        ids = jnp.zeros((8, 8), jnp.int32)
        tbl = jnp.zeros((64, 384), jnp.bfloat16)
        out = pl.pallas_call(
            probe_kernel,
            out_shape=jax.ShapeDtypeStruct((64, 384), jnp.bfloat16),
        )(ids, tbl)
        jax.block_until_ready(out)
        return True
    except Exception:
        return False


# ---------------------------------------------------------------------------
# Sizing helpers
# ---------------------------------------------------------------------------
def _round_up(x, m):
    return ((x + m - 1) // m) * m


def _vmem_limit_bytes():
    """Generation-aware scoped-VMEM limit: ~3/4 of physical, capped at 100 MiB.
    v7x: 64 MiB physical -> 48 MiB; v5e/v6e: 128 MiB -> 96 MiB."""
    try:
        cap = int(pltpu.get_tpu_info().vmem_capacity_bytes)
    except Exception:
        cap = 64 * 1024 * 1024
    return int(min(cap * 3 // 4, 100 * 1024 * 1024))


def _pick_block_b(B, T, D, H, C, table_bytes, vmem_budget):
    """Largest batch tile (multiple of 8, <=1024) whose buffers fit the budget."""
    # Per batch row (conservative, covers fused and unfused paths):
    #   2x double-buffered bf16 embeds stream + gathered bf16 rows + f32 hidden
    #   + f32 pooled + out temporaries + streamed ids.
    per_row = 2 * T * D * 2 + T * D * 2 + T * H * 4 + H * 4 + 3 * C * 4 + 2 * T * 4
    # Resident table + weights/biases + slack.
    fixed = table_bytes + D * H * 2 + H * 4 + H * C * 4 + C * 4 + (1 << 20)
    avail = max(vmem_budget - fixed, per_row * 8)
    tb = max(8, min(avail // per_row, 1024))
    tb = (tb // 8) * 8
    tb = min(tb, _round_up(B, 8))
    return int(tb)


# ---------------------------------------------------------------------------
# Forward wrapper
# ---------------------------------------------------------------------------
def seq_mlp_forward(x, emb_table, w1, b1, w2, b2, *, num_classes=None, block_b=None):
    """x: (B, T) int token ids.  Params are the *padded* params from prepare_params.
    Returns (B, num_classes) float32 (padded classes sliced off)."""
    B, T = x.shape
    Vp, Dp = emb_table.shape
    Hp = w1.shape[1]
    Cp = w2.shape[1]
    C = Cp if num_classes is None else num_classes

    x = jnp.asarray(x, jnp.int32)

    vmem_limit = _vmem_limit_bytes()
    table_bytes = Vp * Dp * jnp.dtype(emb_table.dtype).itemsize
    # Fused in-kernel gather only if the table fits comfortably and the gather lowers.
    fuse = (table_bytes <= vmem_limit // 2) and _in_kernel_gather_supported()

    if block_b is None:
        block_b = _pick_block_b(B, T, Dp, Hp, Cp, table_bytes if fuse else 0, vmem_limit)
    block_b = max(8, (block_b // 8) * 8)

    # Keep >=2 grid blocks whenever the batch allows it so v7x's two TensorCores both
    # get work under dimension_semantics=("parallel",).
    B8 = _round_up(B, 8)
    if B8 >= 16:
        block_b = min(block_b, _round_up(max(B8 // 2, 8), 8))

    num_blocks = -(-B // block_b)
    B_pad = num_blocks * block_b
    if B_pad != B:
        x = jnp.pad(x, ((0, B_pad - B), (0, 0)))  # pad rows with token 0, sliced off later

    weight_specs = [
        pl.BlockSpec((Dp, Hp), lambda i: (0, 0)),   # w1: resident bf16
        pl.BlockSpec((1, Hp), lambda i: (0, 0)),    # b1: resident f32
        pl.BlockSpec((Hp, Cp), lambda i: (0, 0)),   # w2: resident f32
        pl.BlockSpec((1, Cp), lambda i: (0, 0)),    # b2: resident f32
    ]
    out_spec = pl.BlockSpec((block_b, Cp), lambda i: (i, 0))     # lane-dense (Cp=128)
    out_shape = jax.ShapeDtypeStruct((B_pad, Cp), jnp.float32)
    cparams = pltpu.CompilerParams(
        dimension_semantics=("parallel",),
        vmem_limit_bytes=vmem_limit,
    )

    out_padded = None
    if fuse:
        try:
            out_padded = pl.pallas_call(
                seq_mlp_fused_kernel,
                out_shape=out_shape,
                grid=(num_blocks,),
                in_specs=[
                    pl.BlockSpec((block_b, T), lambda i: (i, 0)),   # token ids per block
                    pl.BlockSpec((Vp, Dp), lambda i: (0, 0)),       # bf16 table: resident
                ] + weight_specs,
                out_specs=out_spec,
                compiler_params=cparams,
            )(x, emb_table, w1, b1, w2, b2)
        except Exception:
            out_padded = None  # fall back to the unfused path below

    if out_padded is None:
        # Fallback: gather in plain JAX (bf16 table, already cast once at prep time),
        # streamed as a flat (B_pad*T, Dp) slab -> no bf16 sublane padding of T=8 blocks.
        # TODO(synk): replace with scalar-prefetch + per-row DMA gather for huge vocabs.
        embeds = jnp.take(emb_table, x.reshape(-1), axis=0)        # (B_pad*T, Dp) bf16
        out_padded = pl.pallas_call(
            functools.partial(seq_mlp_kernel, seq_len=T),
            out_shape=out_shape,
            grid=(num_blocks,),
            in_specs=[pl.BlockSpec((block_b * T, Dp), lambda i: (i, 0))] + weight_specs,
            out_specs=out_spec,
            compiler_params=cparams,
        )(embeds, w1, b1, w2, b2)

    return out_padded[:B, :C]


# ---------------------------------------------------------------------------
# Parameters
# ---------------------------------------------------------------------------
def make_params(vocab_size, hidden_size, num_classes, embed_dim=300, seed=0):
    """Unpadded f32 parameters matching the PyTorch module's default init."""
    keys = jax.random.split(jax.random.PRNGKey(seed), 5)
    emb_table = jax.random.normal(keys[0], (vocab_size, embed_dim), dtype=jnp.float32)
    lim1 = 1.0 / jnp.sqrt(jnp.float32(embed_dim))
    w1 = jax.random.uniform(keys[1], (embed_dim, hidden_size), jnp.float32, -lim1, lim1)
    b1 = jax.random.uniform(keys[2], (1, hidden_size), jnp.float32, -lim1, lim1)
    lim2 = 1.0 / jnp.sqrt(jnp.float32(hidden_size))
    w2 = jax.random.uniform(keys[3], (hidden_size, num_classes), jnp.float32, -lim2, lim2)
    b2 = jax.random.uniform(keys[4], (1, num_classes), jnp.float32, -lim2, lim2)
    return emb_table, w1, b1, w2, b2


def prepare_params(emb_table, w1, b1, w2, b2):
    """Zero-pad V/D/H/C to TPU-friendly sizes and pre-cast the MXU-streamed operands
    to bf16 once.  Zero padding is bit-exact; the only accuracy loss is the bf16 cast
    of the embedding table and w1 (first matmul accumulates in f32)."""
    V, D = emb_table.shape
    H = w1.shape[1]
    C = w2.shape[1]
    Vp = _round_up(V, 16)    # bf16 sublane packing = 16 rows
    Dp = _round_up(D, 128)
    Hp = _round_up(H, 128)
    Cp = _round_up(C, 128)   # lane-dense output stores / full MXU N dim
    emb_p = jnp.pad(emb_table, ((0, Vp - V), (0, Dp - D))).astype(jnp.bfloat16)
    w1_p = jnp.pad(w1, ((0, Dp - D), (0, Hp - H))).astype(jnp.bfloat16)
    b1_p = jnp.pad(b1, ((0, 0), (0, Hp - H)))
    w2_p = jnp.pad(w2, ((0, Hp - H), (0, Cp - C)))
    b2_p = jnp.pad(b2, ((0, 0), (0, Cp - C)))
    return emb_p, w1_p, b1_p, w2_p, b2_p


# ---------------------------------------------------------------------------
# Test
# ---------------------------------------------------------------------------
if __name__ == "__main__":
    VOCAB, HIDDEN, NUM_CLASSES = 50, 32, 4
    B, T = 2, 8

    emb_table, w1, b1, w2, b2 = make_params(VOCAB, HIDDEN, NUM_CLASSES)
    params_padded = prepare_params(emb_table, w1, b1, w2, b2)

    key = jax.random.PRNGKey(0)
    x = jax.random.randint(key, (B, T), 0, VOCAB, dtype=jnp.int32)

    out = seq_mlp_forward(x, *params_padded, num_classes=NUM_CLASSES)
    out = jax.block_until_ready(out)

    # Pure-JAX f32 reference on the *unpadded* params (original module semantics).
    embeds = jnp.take(emb_table, x, axis=0)                               # (B, T, 300)
    ref = jnp.max(jnp.maximum(embeds @ w1 + b1, 0.0), axis=1) @ w2 + b2   # (B, C)

    assert out.shape == (B, NUM_CLASSES)
    # Relaxed tolerance: embedding table / w1 are bf16 on the MXU (f32 accumulation).
    assert jnp.allclose(out, ref, atol=5e-2, rtol=5e-2), (out, ref)

    print("KERNEL_OK")
</pallas_src>

<mosaic_0001>
module attributes {stable_mosaic.version = 11 : i64} {
  func.func @seq_mlp_kernel(%arg0: i32, %arg1: memref<64x384xbf16, #tpu.memory_space<vmem>>, %arg2: memref<384x128xbf16, #tpu.memory_space<vmem>>, %arg3: memref<1x128xf32, #tpu.memory_space<vmem>>, %arg4: memref<128x128xf32, #tpu.memory_space<vmem>>, %arg5: memref<1x128xf32, #tpu.memory_space<vmem>>, %arg6: memref<8x128xf32, #tpu.memory_space<vmem>>) attributes {dimension_semantics = [#tpu.dimension_semantics<parallel>], iteration_bounds = array<i64: 1>, scalar_prefetch = 0 : i64, scratch_operands = 0 : i64, tpu.core_type = #tpu.core_type<tc>, window_params = [{transform_indices = @transform_0, window_bounds = array<i64: 64, 384>}, {pipeline_mode = #tpu.pipeline_mode<synchronous>, transform_indices = @transform_1, window_bounds = array<i64: 384, 128>}, {pipeline_mode = #tpu.pipeline_mode<synchronous>, transform_indices = @transform_2, window_bounds = array<i64: 1, 128>}, {pipeline_mode = #tpu.pipeline_mode<synchronous>, transform_indices = @transform_3, window_bounds = array<i64: 128, 128>}, {pipeline_mode = #tpu.pipeline_mode<synchronous>, transform_indices = @transform_4, window_bounds = array<i64: 1, 128>}, {transform_indices = @transform_5, window_bounds = array<i64: 8, 128>}]} {
    %c0 = arith.constant 0 : index
    %c0_0 = arith.constant 0 : index
    %0 = vector.load %arg1[%c0, %c0_0] : memref<64x384xbf16, #tpu.memory_space<vmem>>, vector<64x384xbf16>
    %c0_1 = arith.constant 0 : index
    %c0_2 = arith.constant 0 : index
    %1 = vector.load %arg2[%c0_1, %c0_2] : memref<384x128xbf16, #tpu.memory_space<vmem>>, vector<384x128xbf16>
    %cst = arith.constant dense<0.000000e+00> : vector<64x128xf32>
    %2 = tpu.matmul %0, %1, %cst {dimension_numbers = #tpu.dot_dimension_numbers<[1], [0], [0], [1], [0, 0, 1, 1], [], []>} : vector<64x384xbf16>, vector<384x128xbf16>, vector<64x128xf32> -> vector<64x128xf32>
    %c0_3 = arith.constant 0 : index
    %c0_4 = arith.constant 0 : index
    %3 = vector.load %arg3[%c0_3, %c0_4] : memref<1x128xf32, #tpu.memory_space<vmem>>, vector<1x128xf32>
    %4 = vector.broadcast %3 : vector<1x128xf32> to vector<64x128xf32>
    %5 = arith.addf %2, %4 : vector<64x128xf32>
    %cst_5 = arith.constant 0.000000e+00 : f32
    %6 = vector.broadcast %cst_5 : f32 to vector<64x128xf32>
    %7 = arith.maximumf %5, %6 : vector<64x128xf32>
    %8 = vector.shape_cast %7 : vector<64x128xf32> to vector<8x8x128xf32>
    %cst_6 = arith.constant dense<0xFF800000> : vector<8x128xf32>
    %9 = vector.multi_reduction <maximumf>, %8, %cst_6 [1] : vector<8x8x128xf32> to vector<8x128xf32>
    %c0_7 = arith.constant 0 : index
    %c0_8 = arith.constant 0 : index
    %10 = vector.load %arg4[%c0_7, %c0_8] : memref<128x128xf32, #tpu.memory_space<vmem>>, vector<128x128xf32>
    %cst_9 = arith.constant dense<0.000000e+00> : vector<8x128xf32>
    %11 = tpu.matmul %9, %10, %cst_9 {dimension_numbers = #tpu.dot_dimension_numbers<[1], [0], [0], [1], [0, 0, 1, 1], [], []>} : vector<8x128xf32>, vector<128x128xf32>, vector<8x128xf32> -> vector<8x128xf32>
    %c0_10 = arith.constant 0 : index
    %c0_11 = arith.constant 0 : index
    %12 = vector.load %arg5[%c0_10, %c0_11] : memref<1x128xf32, #tpu.memory_space<vmem>>, vector<1x128xf32>
    %13 = vector.broadcast %12 : vector<1x128xf32> to vector<8x128xf32>
    %14 = arith.addf %11, %13 : vector<8x128xf32>
    %c0_12 = arith.constant 0 : index
    %c0_13 = arith.constant 0 : index
    %15 = vector.load %arg6[%c0_12, %c0_13] : memref<8x128xf32, #tpu.memory_space<vmem>>, vector<8x128xf32>
    tpu.vector_store %arg6[%c0_12, %c0_13], %14 {strides = array<i32>} : memref<8x128xf32, #tpu.memory_space<vmem>>, vector<8x128xf32>,
    return
  }
  func.func @transform_0(%arg0: i32) -> (i32, i32) {
    %c0_i32 = arith.constant 0 : i32
    %c0_i32_0 = arith.constant 0 : i32
    return %arg0, %c0_i32 : i32, i32
  }
  func.func @transform_1(%arg0: i32) -> (i32, i32) {
    %c0_i32 = arith.constant 0 : i32
    %c0_i32_0 = arith.constant 0 : i32
    %c0_i32_1 = arith.constant 0 : i32
    return %c0_i32, %c0_i32_0 : i32, i32
  }
  func.func @transform_2(%arg0: i32) -> (i32, i32) {
    %c0_i32 = arith.constant 0 : i32
    %c0_i32_0 = arith.constant 0 : i32
    %c0_i32_1 = arith.constant 0 : i32
    return %c0_i32, %c0_i32_0 : i32, i32
  }
  func.func @transform_3(%arg0: i32) -> (i32, i32) {
    %c0_i32 = arith.constant 0 : i32
    %c0_i32_0 = arith.constant 0 : i32
    %c0_i32_1 = arith.constant 0 : i32
    return %c0_i32, %c0_i32_0 : i32, i32
  }
  func.func @transform_4(%arg0: i32) -> (i32, i32) {
    %c0_i32 = arith.constant 0 : i32
    %c0_i32_0 = arith.constant 0 : i32
    %c0_i32_1 = arith.constant 0 : i32
    return %c0_i32, %c0_i32_0 : i32, i32
  }
  func.func @transform_5(%arg0: i32) -> (i32, i32) {
    %c0_i32 = arith.constant 0 : i32
    %c0_i32_0 = arith.constant 0 : i32
    return %arg0, %c0_i32 : i32, i32
  }
}

</mosaic_0001>

<llo_original>
// kernel: tpu_custom_call.1
$region0: #{tpu_custom_call.1}
  #allocation0 [shape = 'u32[]', space=smem, size = 0x4, offset = 0x4, fixed_abs, tag = 'smem constant byte address 0x4 - core index']
  #allocation1 [shape = 'u32[144,128]{1,0:T(1,128)}', space=vmem, size = 0x12000, scoped, tag = 'internal scratch']
  %s0 = inlined_call_operand.hbm [shape: bf16[64,384], index: 0, kind: input, shape index: {}]
  %s1 = inlined_call_operand.hbm [shape: bf16[384,128], index: 1, kind: input, shape index: {}]
  %s2 = inlined_call_operand.vmem [shape: f32[1,128], index: 2, kind: input, shape index: {}]
  %s3 = inlined_call_operand.hbm [shape: f32[128,128], index: 3, kind: input, shape index: {}]
  %s4 = inlined_call_operand.vmem [shape: f32[1,128], index: 4, kind: input, shape index: {}]
  %s5 = inlined_call_operand.hbm [shape: f32[8,128], index: 5, kind: output, shape index: {}]
  %s6 = sld [smem:[#allocation0]]
  $region42: #{tpu_custom_call.1} parent=0
    _
  %s8 = ssub.s32 1, %s6
  %s9 = scalar_select 0, %s8, %s6
  $region1: #{tpu_custom_call.1} parent=0
    #allocation2 [shape = 'u8[49152]{0}', space=vmem, size = 0xc000, scoped, tag = 'input window, operand 0, single buffered']
    #allocation3 [shape = 's32[1]{0}', space=sflag, size = 0x4, scoped, tag = 'scoped memory for tpu_custom_call.1']
    #allocation4 [shape = 's32[1]{0}', space=sflag, size = 0x4, scoped, tag = 'scoped memory for tpu_custom_call.1']
    #allocation5 [shape = 'u8[98304]{0}', space=vmem, size = 0x18000, scoped, tag = 'input window, operand 1, single buffered']
    #allocation6 [shape = 's32[1]{0}', space=sflag, size = 0x4, scoped, tag = 'scoped memory for tpu_custom_call.1']
    #allocation7 [shape = 'u8[65536]{0}', space=vmem, size = 0x10000, scoped, tag = 'input window, operand 3, single buffered']
    #allocation8 [shape = 'u8[4096]{0}', space=vmem, size = 0x1000, scoped, tag = 'output window, operand 0, single buffered']
    %10 = vsyncpa [#allocation3], 0
    %11 = vsyncpa [#allocation6], 0
    %12 = vsyncpa [#allocation4], 0
    // Predicated region
    $region2: #{tpu_custom_call.1} parent=1 // pred_check
      _
    $region3: #{tpu_custom_call.1} parent=1 // pred_check_branch
      %14 = sbr.rel (0) target = $region5
    $region4: #{tpu_custom_call.1} parent=1 // pred_region
      %s16 = ssub.s32 1536, 1536
      %17 = vsyncadd [#allocation3], %s16
      %s18 = sshll.u32 [#allocation2], 4
      %s19 = int_to_ptr.vmem [resolvable:$true] %s18
      %24 = dma.hbm_to_vmem [thread:$0]  %s0, 1536, %s19, [#allocation3], 192, 192, 12
    $region5: #{tpu_custom_call.1} parent=1 // pred_fallthru
      _
    // Predicated region
    $region6: #{tpu_custom_call.1} parent=1 // pred_check
      _
    $region7: #{tpu_custom_call.1} parent=1 // pred_check_branch
      %26 = sbr.rel (0) target = $region9
    $region8: #{tpu_custom_call.1} parent=1 // pred_region
      %s28 = ssub.s32 3072, 3072
      %29 = vsyncadd [#allocation6], %s28
      %s30 = sshll.u32 [#allocation5], 4
      %s31 = int_to_ptr.vmem [resolvable:$true] %s30
      %36 = dma.hbm_to_vmem [thread:$0]  %s1, 3072, %s31, [#allocation6], 64, 64, 4
    $region9: #{tpu_custom_call.1} parent=1 // pred_fallthru
      _
    // Predicated region
    $region10: #{tpu_custom_call.1} parent=1 // pred_check
      _
    $region11: #{tpu_custom_call.1} parent=1 // pred_check_branch
      %38 = sbr.rel (0) target = $region13
    $region12: #{tpu_custom_call.1} parent=1 // pred_region
      _
    $region13: #{tpu_custom_call.1} parent=1 // pred_fallthru
      _
    // Predicated region
    $region14: #{tpu_custom_call.1} parent=1 // pred_check
      _
    $region15: #{tpu_custom_call.1} parent=1 // pred_check_branch
      %40 = sbr.rel (0) target = $region17
    $region16: #{tpu_custom_call.1} parent=1 // pred_region
      %s42 = ssub.s32 2048, 2048
      %43 = vsyncadd [#allocation6], %s42
      %s44 = sshll.u32 [#allocation7], 4
      %s45 = int_to_ptr.vmem [resolvable:$true] %s44
      %50 = dma.hbm_to_vmem [thread:$0]  %s3, 2048, %s45, [#allocation6], 128, 128, 8
    $region17: #{tpu_custom_call.1} parent=1 // pred_fallthru
      _
    // Predicated region
    $region18: #{tpu_custom_call.1} parent=1 // pred_check
      _
    $region19: #{tpu_custom_call.1} parent=1 // pred_check_branch
      %52 = sbr.rel (0) target = $region21
    $region20: #{tpu_custom_call.1} parent=1 // pred_region
      _
    $region21: #{tpu_custom_call.1} parent=1 // pred_fallthru
      _
    // Predicated region
    $region22: #{tpu_custom_call.1} parent=1 // pred_check
      _
    $region23: #{tpu_custom_call.1} parent=1 // pred_check_branch
      %54 = sbr.rel (0) target = $region25
    $region24: #{tpu_custom_call.1} parent=1 // pred_region
      %55 = dma.done [#allocation3], 1536
    $region25: #{tpu_custom_call.1} parent=1 // pred_fallthru
      _
    // Predicated region
    $region26: #{tpu_custom_call.1} parent=1 // pred_check
      _
    $region27: #{tpu_custom_call.1} parent=1 // pred_check_branch
      %57 = sbr.rel (0) target = $region29
    $region28: #{tpu_custom_call.1} parent=1 // pred_region
      %58 = dma.done [#allocation6], 3072
    $region29: #{tpu_custom_call.1} parent=1 // pred_fallthru
      _
    // Predicated region
    $region30: #{tpu_custom_call.1} parent=1 // pred_check
      _
    $region31: #{tpu_custom_call.1} parent=1 // pred_check_branch
      %60 = sbr.rel (0) target = $region33
    $region32: #{tpu_custom_call.1} parent=1 // pred_region
      %61 = dma.done [#allocation6], 2048
    $region33: #{tpu_custom_call.1} parent=1 // pred_fallthru
      _
    %v63 = vld [vmem:[#allocation2] sm:$0xff]
    %v64 = vld [vmem:[#allocation2 + $0x8] sm:$0xf]
    %v65 = vld [vmem:[#allocation2 + $0xc] sm:$0xff]
    %v66 = vld [vmem:[#allocation2 + $0x14] sm:$0xf]
    %v67 = vld [vmem:[#allocation2 + $0x18] sm:$0xff]
    %v68 = vld [vmem:[#allocation2 + $0x20] sm:$0xf]
    %v69 = vld [vmem:[#allocation2 + $0x24] sm:$0xff]
    %v70 = vld [vmem:[#allocation2 + $0x2c] sm:$0xf]
    %v71 = vld [vmem:[#allocation2 + $0x30] sm:$0xff]
    %v72 = vld [vmem:[#allocation2 + $0x38] sm:$0xf]
    %v73 = vld [vmem:[#allocation2 + $0x3c] sm:$0xff]
    %v74 = vld [vmem:[#allocation2 + $0x44] sm:$0xf]
    %v75 = vld [vmem:[#allocation2 + $0x48] sm:$0xff]
    %v76 = vld [vmem:[#allocation2 + $0x50] sm:$0xf]
    %v77 = vld [vmem:[#allocation2 + $0x54] sm:$0xff]
    %v78 = vld [vmem:[#allocation2 + $0x5c] sm:$0xf]
    %v79 = vld [vmem:[#allocation5] sm:$0xf]
    %v80 = vld [vmem:[#allocation5 + $0x4] sm:$0xf]
    %v81 = vld [vmem:[#allocation5 + $0x8] sm:$0xf]
    %v82 = vld [vmem:[#allocation5 + $0xc] sm:$0xf]
    %v83 = vld [vmem:[#allocation5 + $0x10] sm:$0xf]
    %v84 = vld [vmem:[#allocation5 + $0x14] sm:$0xf]
    %v85 = vld [vmem:[#allocation5 + $0x18] sm:$0xf]
    %v86 = vld [vmem:[#allocation5 + $0x1c] sm:$0xf]
    %v87 = vld [vmem:[#allocation5 + $0x20] sm:$0xf]
    %v88 = vld [vmem:[#allocation5 + $0x24] sm:$0xf]
    %v89 = vld [vmem:[#allocation5 + $0x28] sm:$0xf]
    %v90 = vld [vmem:[#allocation5 + $0x2c] sm:$0xf]
    %v91 = vld [vmem:[#allocation5 + $0x30] sm:$0xf]
    %v92 = vld [vmem:[#allocation5 + $0x34] sm:$0xf]
    %v93 = vld [vmem:[#allocation5 + $0x38] sm:$0xf]
    %v94 = vld [vmem:[#allocation5 + $0x3c] sm:$0xf]
    %v95 = vld [vmem:[#allocation5 + $0x40] sm:$0xf]
    %v96 = vld [vmem:[#allocation5 + $0x44] sm:$0xf]
    %v97 = vld [vmem:[#allocation5 + $0x48] sm:$0xf]
    %v98 = vld [vmem:[#allocation5 + $0x4c] sm:$0xf]
    %v99 = vld [vmem:[#allocation5 + $0x50] sm:$0xf]
    %v100 = vld [vmem:[#allocation5 + $0x54] sm:$0xf]
    %v101 = vld [vmem:[#allocation5 + $0x58] sm:$0xf]
    %v102 = vld [vmem:[#allocation5 + $0x5c] sm:$0xf]
    %v103 = vld [vmem:[#allocation5 + $0x60] sm:$0xf]
    %v104 = vld [vmem:[#allocation5 + $0x64] sm:$0xf]
    %v105 = vld [vmem:[#allocation5 + $0x68] sm:$0xf]
    %v106 = vld [vmem:[#allocation5 + $0x6c] sm:$0xf]
    %v107 = vld [vmem:[#allocation5 + $0x70] sm:$0xf]
    %v108 = vld [vmem:[#allocation5 + $0x74] sm:$0xf]
    %v109 = vld [vmem:[#allocation5 + $0x78] sm:$0xf]
    %v110 = vld [vmem:[#allocation5 + $0x7c] sm:$0xf]
    %v111 = vld [vmem:[#allocation5 + $0x80] sm:$0xf]
    %v112 = vld [vmem:[#allocation5 + $0x84] sm:$0xf]
    %v113 = vld [vmem:[#allocation5 + $0x88] sm:$0xf]
    %v114 = vld [vmem:[#allocation5 + $0x8c] sm:$0xf]
    %v115 = vld [vmem:[#allocation5 + $0x90] sm:$0xf]
    %v116 = vld [vmem:[#allocation5 + $0x94] sm:$0xf]
    %v117 = vld [vmem:[#allocation5 + $0x98] sm:$0xf]
    %v118 = vld [vmem:[#allocation5 + $0x9c] sm:$0xf]
    %v119 = vld [vmem:[#allocation5 + $0xa0] sm:$0xf]
    %v120 = vld [vmem:[#allocation5 + $0xa4] sm:$0xf]
    %v121 = vld [vmem:[#allocation5 + $0xa8] sm:$0xf]
    %v122 = vld [vmem:[#allocation5 + $0xac] sm:$0xf]
    %v123 = vld [vmem:[#allocation5 + $0xb0] sm:$0xf]
    %v124 = vld [vmem:[#allocation5 + $0xb4] sm:$0xf]
    %v125 = vld [vmem:[#allocation5 + $0xb8] sm:$0xf]
    %v126 = vld [vmem:[#allocation5 + $0xbc] sm:$0xf]
    %v127 = vld [vmem:[%s2] sm:$0x1]
    %v129 = vlaneseq
    %v130 = vshrl.u32 %v129, 7
    %v131 = vsub.s32 0, %v130
    %v132 = vrot.slane %v127, %v131
    %v150 = vunpack.c.l.b16 %v63
    %v151 = vunpack.c.h.b16 %v63
    %v152 = vunpack.c.l.b16 %v64
    %v153 = vunpack.c.l.b16 %v65
    %v154 = vunpack.c.h.b16 %v65
    %v155 = vunpack.c.l.b16 %v66
    %v156 = vunpack.c.l.b16 %v67
    %v157 = vunpack.c.h.b16 %v67
    %v158 = vunpack.c.l.b16 %v68
    %v159 = vunpack.c.l.b16 %v69
    %v160 = vunpack.c.h.b16 %v69
    %v161 = vunpack.c.l.b16 %v70
    %v162 = vunpack.c.l.b16 %v71
    %v163 = vunpack.c.h.b16 %v71
    %v164 = vunpack.c.l.b16 %v72
    %v165 = vunpack.c.l.b16 %v73
    %v166 = vunpack.c.h.b16 %v73
    %v167 = vunpack.c.l.b16 %v74
    %v168 = vunpack.c.l.b16 %v75
    %v169 = vunpack.c.h.b16 %v75
    %v170 = vunpack.c.l.b16 %v76
    %v171 = vunpack.c.l.b16 %v77
    %v172 = vunpack.c.h.b16 %v77
    %v173 = vunpack.c.l.b16 %v78
    %v174 = vpack.c.b16 %v153, %v150
    %v175 = vpack.c.b16 %v154, %v151
    %v176 = vpack.c.b16 %v155, %v152
    %v177 = vpack.c.b16 %v159, %v156
    %v178 = vpack.c.b16 %v160, %v157
    %v179 = vpack.c.b16 %v161, %v158
    %v180 = vpack.c.b16 %v165, %v162
    %v181 = vpack.c.b16 %v166, %v163
    %v182 = vpack.c.b16 %v167, %v164
    %v183 = vpack.c.b16 %v171, %v168
    %v184 = vpack.c.b16 %v172, %v169
    %v185 = vpack.c.b16 %v173, %v170
    %v246 = vunpack.c.l.b16 %v79
    %v247 = vunpack.c.l.b16 %v80
    %v248 = vunpack.c.l.b16 %v81
    %v249 = vunpack.c.l.b16 %v82
    %v250 = vunpack.c.l.b16 %v83
    %v251 = vunpack.c.l.b16 %v84
    %v252 = vunpack.c.l.b16 %v85
    %v253 = vunpack.c.l.b16 %v86
    %v254 = vunpack.c.l.b16 %v87
    %v255 = vunpack.c.l.b16 %v88
    %v256 = vunpack.c.l.b16 %v89
    %v257 = vunpack.c.l.b16 %v90
    %v258 = vunpack.c.l.b16 %v91
    %v259 = vunpack.c.l.b16 %v92
    %v260 = vunpack.c.l.b16 %v93
    %v261 = vunpack.c.l.b16 %v94
    %v262 = vunpack.c.l.b16 %v95
    %v263 = vunpack.c.l.b16 %v96
    %v264 = vunpack.c.l.b16 %v97
    %v265 = vunpack.c.l.b16 %v98
    %v266 = vunpack.c.l.b16 %v99
    %v267 = vunpack.c.l.b16 %v100
    %v268 = vunpack.c.l.b16 %v101
    %v269 = vunpack.c.l.b16 %v102
    %v270 = vunpack.c.l.b16 %v103
    %v271 = vunpack.c.l.b16 %v104
    %v272 = vunpack.c.l.b16 %v105
    %v273 = vunpack.c.l.b16 %v106
    %v274 = vunpack.c.l.b16 %v107
    %v275 = vunpack.c.l.b16 %v108
    %v276 = vunpack.c.l.b16 %v109
    %v277 = vunpack.c.l.b16 %v110
    %v278 = vunpack.c.l.b16 %v111
    %v279 = vunpack.c.l.b16 %v112
    %v280 = vunpack.c.l.b16 %v113
    %v281 = vunpack.c.l.b16 %v114
    %v282 = vunpack.c.l.b16 %v115
    %v283 = vunpack.c.l.b16 %v116
    %v284 = vunpack.c.l.b16 %v117
    %v285 = vunpack.c.l.b16 %v118
    %v286 = vunpack.c.l.b16 %v119
    %v287 = vunpack.c.l.b16 %v120
    %v288 = vunpack.c.l.b16 %v121
    %v289 = vunpack.c.l.b16 %v122
    %v290 = vunpack.c.l.b16 %v123
    %v291 = vunpack.c.l.b16 %v124
    %v292 = vunpack.c.l.b16 %v125
    %v293 = vunpack.c.l.b16 %v126
    %v294 = vpack.c.b16 %v247, %v246
    %v295 = vpack.c.b16 %v249, %v248
    %v296 = vpack.c.b16 %v251, %v250
    %v297 = vpack.c.b16 %v253, %v252
    %v298 = vpack.c.b16 %v255, %v254
    %v299 = vpack.c.b16 %v257, %v256
    %v300 = vpack.c.b16 %v259, %v258
    %v301 = vpack.c.b16 %v261, %v260
    %v302 = vpack.c.b16 %v263, %v262
    %v303 = vpack.c.b16 %v265, %v264
    %v304 = vpack.c.b16 %v267, %v266
    %v305 = vpack.c.b16 %v269, %v268
    %v306 = vpack.c.b16 %v271, %v270
    %v307 = vpack.c.b16 %v273, %v272
    %v308 = vpack.c.b16 %v275, %v274
    %v309 = vpack.c.b16 %v277, %v276
    %v310 = vpack.c.b16 %v279, %v278
    %v311 = vpack.c.b16 %v281, %v280
    %v312 = vpack.c.b16 %v283, %v282
    %v313 = vpack.c.b16 %v285, %v284
    %v314 = vpack.c.b16 %v287, %v286
    %v315 = vpack.c.b16 %v289, %v288
    %v316 = vpack.c.b16 %v291, %v290
    %v317 = vpack.c.b16 %v293, %v292
    %342 = vmatprep.subr.bf16.mxu0 0
    %343 = vmatpush1.bf16.msra.mxu0 %v294
    %344 = vmatprep.subr.bf16.mxu0 0
    %345 = vmatpush1.bf16.msra.mxu0 %v295
    %346 = vmatprep.subr.bf16.mxu0 0
    %347 = vmatpush1.bf16.msra.mxu0 %v296
    %348 = vmatprep.subr.bf16.mxu0 0
    %349 = vmatpush1.bf16.msra.mxu0 %v297
    %350 = vmatprep.subr.bf16.mxu0 0
    %351 = vmatpush1.bf16.msra.mxu0 %v298
    %352 = vmatprep.subr.bf16.mxu0 0
    %353 = vmatpush1.bf16.msra.mxu0 %v299
    %354 = vmatprep.subr.bf16.mxu0 0
    %355 = vmatpush1.bf16.msra.mxu0 %v300
    %356 = vmatprep.subr.bf16.mxu0 0
    %357 = vmatpush1.bf16.msra.mxu0 %v301
    %358 = vmatprep.subr.bf16.mxu0 0
    %359 = vmatpush1.bf16.msra.mxu0 %v302
    %360 = vmatprep.subr.bf16.mxu0 0
    %361 = vmatpush1.bf16.msra.mxu0 %v303
    %362 = vmatprep.subr.bf16.mxu0 0
    %363 = vmatpush1.bf16.msra.mxu0 %v304
    %364 = vmatprep.subr.bf16.mxu0 0
    %365 = vmatpush1.bf16.msra.mxu0 %v305
    %366 = vmatprep.subr.bf16.mxu0 0
    %367 = vmatpush1.bf16.msra.mxu0 %v306
    %368 = vmatprep.subr.bf16.mxu0 0
    %369 = vmatpush1.bf16.msra.mxu0 %v307
    %370 = vmatprep.subr.bf16.mxu0 0
    %371 = vmatpush1.bf16.msra.mxu0 %v308
    %372 = vmatprep.subr.bf16.mxu0 0
    %373 = vmatpush1.bf16.msra.mxu0 %v309
    %374 = vmatprep.mubr.bf16.mxu0 %v175
    %375 = vmatmul.mubr.bf16.gmra.mrb[0].mxu0 %v174
    %v376 = vpop.f32.mrb[0].mxu0
    %v377 = vadd.f32 %v132, %v376
    %v378 = vpop.f32.mrb[0].mxu0
    %v379 = vpop.f32.mrb[0].mxu0
    %v380 = vadd.f32 %v132, %v379
    %v381 = vpop.f32.mrb[0].mxu0
    %382 = vmatprep.mubr.bf16.mxu0 %v178
    %383 = vmatmul.mubr.bf16.gmra.mrb[0].mxu0 %v177
    %v384 = vpop.f32.mrb[0].mxu0
    %v385 = vadd.f32 %v132, %v384
    %v386 = vpop.f32.mrb[0].mxu0
    %v387 = vpop.f32.mrb[0].mxu0
    %v388 = vadd.f32 %v132, %v387
    %v389 = vpop.f32.mrb[0].mxu0
    %390 = vmatprep.mubr.bf16.mxu0 %v181
    %391 = vmatmul.mubr.bf16.gmra.mrb[0].mxu0 %v180
    %v392 = vpop.f32.mrb[0].mxu0
    %v393 = vadd.f32 %v132, %v392
    %v394 = vpop.f32.mrb[0].mxu0
    %v395 = vpop.f32.mrb[0].mxu0
    %v396 = vadd.f32 %v132, %v395
    %v397 = vpop.f32.mrb[0].mxu0
    %398 = vmatprep.mubr.bf16.mxu0 %v184
    %399 = vmatmul.mubr.bf16.gmra.mrb[0].mxu0 %v183
    %v400 = vpop.f32.mrb[0].mxu0
    %v401 = vadd.f32 %v132, %v400
    %v402 = vpop.f32.mrb[0].mxu0
    %v403 = vpop.f32.mrb[0].mxu0
    %v404 = vadd.f32 %v132, %v403
    %v405 = vpop.f32.mrb[0].mxu0
    %406 = vdwg.mxu0
    %407 = vmatprep.subr.bf16.mxu0 0
    %408 = vmatpush1.bf16.msra.mxu0 %v310
    %409 = vmatprep.subr.bf16.mxu0 0
    %410 = vmatpush1.bf16.msra.mxu0 %v311
    %411 = vmatprep.subr.bf16.mxu0 0
    %412 = vmatpush1.bf16.msra.mxu0 %v312
    %413 = vmatprep.subr.bf16.mxu0 0
    %414 = vmatpush1.bf16.msra.mxu0 %v313
    %415 = vmatprep.subr.bf16.mxu0 0
    %416 = vmatpush1.bf16.msra.mxu0 %v314
    %417 = vmatprep.subr.bf16.mxu0 0
    %418 = vmatpush1.bf16.msra.mxu0 %v315
    %419 = vmatprep.subr.bf16.mxu0 0
    %420 = vmatpush1.bf16.msra.mxu0 %v316
    %421 = vmatprep.subr.bf16.mxu0 0
    %422 = vmatpush1.bf16.msra.mxu0 %v317
    %423 = vmatprep.subr.bf16.mxu0 0
    %424 = vmatpush1.bf16.msra.mxu0 0
    %425 = vmatprep.subr.bf16.mxu0 0
    %426 = vmatpush1.bf16.msra.mxu0 0
    %427 = vmatprep.subr.bf16.mxu0 0
    %428 = vmatpush1.bf16.msra.mxu0 0
    %429 = vmatprep.subr.bf16.mxu0 0
    %430 = vmatpush1.bf16.msra.mxu0 0
    %431 = vmatprep.subr.bf16.mxu0 0
    %432 = vmatpush1.bf16.msra.mxu0 0
    %433 = vmatprep.subr.bf16.mxu0 0
    %434 = vmatpush1.bf16.msra.mxu0 0
    %435 = vmatprep.subr.bf16.mxu0 0
    %436 = vmatpush1.bf16.msra.mxu0 0
    %437 = vmatprep.subr.bf16.mxu0 0
    %438 = vmatpush1.bf16.msra.mxu0 0
    %439 = vmatprep.mubr.bf16.mxu0 0
    %440 = vmatmul.mubr.bf16.gmra.mrb[0].mxu0 %v176
    %v441 = vpop.f32.mrb[0].mxu0
    %v442 = vadd.f32 %v377, %v441
    %v443 = vpop.f32.mrb[0].mxu0
    %v444 = vpop.f32.mrb[0].mxu0
    %v445 = vadd.f32 %v380, %v444
    %v446 = vpop.f32.mrb[0].mxu0
    %447 = vmatprep.mubr.bf16.mxu0 0
    %448 = vmatmul.mubr.bf16.gmra.mrb[0].mxu0 %v179
    %v449 = vpop.f32.mrb[0].mxu0
    %v450 = vadd.f32 %v385, %v449
    %v451 = vpop.f32.mrb[0].mxu0
    %v452 = vpop.f32.mrb[0].mxu0
    %v453 = vadd.f32 %v388, %v452
    %v454 = vpop.f32.mrb[0].mxu0
    %455 = vmatprep.mubr.bf16.mxu0 0
    %456 = vmatmul.mubr.bf16.gmra.mrb[0].mxu0 %v182
    %v457 = vpop.f32.mrb[0].mxu0
    %v458 = vadd.f32 %v393, %v457
    %v459 = vpop.f32.mrb[0].mxu0
    %v460 = vpop.f32.mrb[0].mxu0
    %v461 = vadd.f32 %v396, %v460
    %v462 = vpop.f32.mrb[0].mxu0
    %463 = vmatprep.mubr.bf16.mxu0 0
    %464 = vmatmul.mubr.bf16.gmra.mrb[0].mxu0 %v185
    %v465 = vpop.f32.mrb[0].mxu0
    %v466 = vadd.f32 %v401, %v465
    %v467 = vpop.f32.mrb[0].mxu0
    %v468 = vpop.f32.mrb[0].mxu0
    %v469 = vadd.f32 %v404, %v468
    %v470 = vpop.f32.mrb[0].mxu0
    %471 = vdwg.mxu0
    %v472 = vmax.f32 %v442, 0.0
    %v473 = vmax.f32 %v445, 0.0
    %v474 = vmax.f32 %v450, 0.0
    %v475 = vmax.f32 %v453, 0.0
    %v476 = vmax.f32 %v458, 0.0
    %v477 = vmax.f32 %v461, 0.0
    %v478 = vmax.f32 %v466, 0.0
    %v479 = vmax.f32 %v469, 0.0
    %v480 = vrot.slane %v472, 4
    %v481 = vmax.f32 %v472, %v480
    %v482 = vrot.slane %v481, 2
    %v483 = vmax.f32 %v481, %v482
    %v484 = vrot.slane %v483, 1
    %v485 = vmax.f32 %v483, %v484
    %v486 = vrot.slane %v473, 4
    %v487 = vmax.f32 %v473, %v486
    %v488 = vrot.slane %v487, 2
    %v489 = vmax.f32 %v487, %v488
    %v490 = vrot.slane %v489, 1
    %v491 = vmax.f32 %v489, %v490
    %v492 = vrot.slane %v474, 4
    %v493 = vmax.f32 %v474, %v492
    %v494 = vrot.slane %v493, 2
    %v495 = vmax.f32 %v493, %v494
    %v496 = vrot.slane %v495, 1
    %v497 = vmax.f32 %v495, %v496
    %v498 = vrot.slane %v475, 4
    %v499 = vmax.f32 %v475, %v498
    %v500 = vrot.slane %v499, 2
    %v501 = vmax.f32 %v499, %v500
    %v502 = vrot.slane %v501, 1
    %v503 = vmax.f32 %v501, %v502
    %v504 = vrot.slane %v476, 4
    %v505 = vmax.f32 %v476, %v504
    %v506 = vrot.slane %v505, 2
    %v507 = vmax.f32 %v505, %v506
    %v508 = vrot.slane %v507, 1
    %v509 = vmax.f32 %v507, %v508
    %v510 = vrot.slane %v477, 4
    %v511 = vmax.f32 %v477, %v510
    %v512 = vrot.slane %v511, 2
    %v513 = vmax.f32 %v511, %v512
    %v514 = vrot.slane %v513, 1
    %v515 = vmax.f32 %v513, %v514
    %v516 = vrot.slane %v478, 4
    %v517 = vmax.f32 %v478, %v516
    %v518 = vrot.slane %v517, 2
    %v519 = vmax.f32 %v517, %v518
    %v520 = vrot.slane %v519, 1
    %v521 = vmax.f32 %v519, %v520
    %v522 = vrot.slane %v479, 4
    %v523 = vmax.f32 %v479, %v522
    %v524 = vrot.slane %v523, 2
    %v525 = vmax.f32 %v523, %v524
    %v526 = vrot.slane %v525, 1
    %v527 = vmax.f32 %v525, %v526
    %v528 = vld [vmem:[#allocation7] sm:$0xff]
    %v529 = vld [vmem:[#allocation7 + $0x8] sm:$0xff]
    %v530 = vld [vmem:[#allocation7 + $0x10] sm:$0xff]
    %v531 = vld [vmem:[#allocation7 + $0x18] sm:$0xff]
    %v532 = vld [vmem:[#allocation7 + $0x20] sm:$0xff]
    %v533 = vld [vmem:[#allocation7 + $0x28] sm:$0xff]
    %v534 = vld [vmem:[#allocation7 + $0x30] sm:$0xff]
    %v535 = vld [vmem:[#allocation7 + $0x38] sm:$0xff]
    %v536 = vld [vmem:[#allocation7 + $0x40] sm:$0xff]
    %v537 = vld [vmem:[#allocation7 + $0x48] sm:$0xff]
    %v538 = vld [vmem:[#allocation7 + $0x50] sm:$0xff]
    %v539 = vld [vmem:[#allocation7 + $0x58] sm:$0xff]
    %v540 = vld [vmem:[#allocation7 + $0x60] sm:$0xff]
    %v541 = vld [vmem:[#allocation7 + $0x68] sm:$0xff]
    %v542 = vld [vmem:[#allocation7 + $0x70] sm:$0xff]
    %v543 = vld [vmem:[#allocation7 + $0x78] sm:$0xff]
    %v544 = vld [vmem:[%s4] sm:$0x1]
    %v546 = vlaneseq
    %v547 = vshrl.u32 %v546, 7
    %v548 = vsub.s32 0, %v547
    %v549 = vrot.slane %v544, %v548
    %vm559 = vcmask 1041409
    %v560 = vsel %vm559, %v491, %v485
    %vm561 = vcmask 1042434
    %v562 = vsel %vm561, %v497, %v560
    %vm563 = vcmask 1043459
    %v564 = vsel %vm563, %v503, %v562
    %vm565 = vcmask 1044484
    %v566 = vsel %vm565, %v509, %v564
    %vm567 = vcmask 1045509
    %v568 = vsel %vm567, %v515, %v566
    %vm569 = vcmask 1046534
    %v570 = vsel %vm569, %v521, %v568
    %vm571 = vcmask 1047559
    %v572 = vsel %vm571, %v527, %v570
    %574 = vmatprep.subr.mxu0 0.0
    %575 = vmatpush1.msra.mxu0 %v528
    %576 = vmatprep.subr.mxu0 0.0
    %577 = vmatpush1.msra.mxu0 %v529
    %578 = vmatprep.subr.mxu0 0.0
    %579 = vmatpush1.msra.mxu0 %v530
    %580 = vmatprep.subr.mxu0 0.0
    %581 = vmatpush1.msra.mxu0 %v531
    %582 = vmatprep.subr.mxu0 0.0
    %583 = vmatpush1.msra.mxu0 %v532
    %584 = vmatprep.subr.mxu0 0.0
    %585 = vmatpush1.msra.mxu0 %v533
    %586 = vmatprep.subr.mxu0 0.0
    %587 = vmatpush1.msra.mxu0 %v534
    %588 = vmatprep.subr.mxu0 0.0
    %589 = vmatpush1.msra.mxu0 %v535
    %590 = vmatprep.subr.mxu0 0.0
    %591 = vmatpush1.msra.mxu0 %v536
    %592 = vmatprep.subr.mxu0 0.0
    %593 = vmatpush1.msra.mxu0 %v537
    %594 = vmatprep.subr.mxu0 0.0
    %595 = vmatpush1.msra.mxu0 %v538
    %596 = vmatprep.subr.mxu0 0.0
    %597 = vmatpush1.msra.mxu0 %v539
    %598 = vmatprep.subr.mxu0 0.0
    %599 = vmatpush1.msra.mxu0 %v540
    %600 = vmatprep.subr.mxu0 0.0
    %601 = vmatpush1.msra.mxu0 %v541
    %602 = vmatprep.subr.mxu0 0.0
    %603 = vmatpush1.msra.mxu0 %v542
    %604 = vmatprep.subr.mxu0 0.0
    %605 = vmatpush1.msra.mxu0 %v543
    %606 = vmatprep.subr.mxu0 0.0
    %607 = vmatpush1.msra.mxu0 0.0
    %608 = vmatprep.subr.mxu0 0.0
    %609 = vmatpush1.msra.mxu0 0.0
    %610 = vmatprep.subr.mxu0 0.0
    %611 = vmatpush1.msra.mxu0 0.0
    %612 = vmatprep.subr.mxu0 0.0
    %613 = vmatpush1.msra.mxu0 0.0
    %614 = vmatprep.subr.mxu0 0.0
    %615 = vmatpush1.msra.mxu0 0.0
    %616 = vmatprep.subr.mxu0 0.0
    %617 = vmatpush1.msra.mxu0 0.0
    %618 = vmatprep.subr.mxu0 0.0
    %619 = vmatpush1.msra.mxu0 0.0
    %620 = vmatprep.subr.mxu0 0.0
    %621 = vmatpush1.msra.mxu0 0.0
    %622 = vmatprep.subr.mxu0 0.0
    %623 = vmatpush1.msra.mxu0 0.0
    %624 = vmatprep.subr.mxu0 0.0
    %625 = vmatpush1.msra.mxu0 0.0
    %626 = vmatprep.subr.mxu0 0.0
    %627 = vmatpush1.msra.mxu0 0.0
    %628 = vmatprep.subr.mxu0 0.0
    %629 = vmatpush1.msra.mxu0 0.0
    %630 = vmatprep.subr.mxu0 0.0
    %631 = vmatpush1.msra.mxu0 0.0
    %632 = vmatprep.subr.mxu0 0.0
    %633 = vmatpush1.msra.mxu0 0.0
    %634 = vmatprep.subr.mxu0 0.0
    %635 = vmatpush1.msra.mxu0 0.0
    %636 = vmatprep.subr.mxu0 0.0
    %637 = vmatpush1.msra.mxu0 0.0
    %638 = vmatprep.mubr.f32.mxu0 0.0
    %639 = vmatmul.mubr.f32.gmra.mrb[0].mxu0 %v572
    %v640 = vpop.f32.mrb[0].mxu0
    %v641 = vadd.f32 %v549, %v640
    %v642 = vpop.f32.mrb[0].mxu0
    %643 = vdwg.mxu0
    %644 = vst [vmem:[#allocation8] sm:$0xff] %v641
    // Predicated region
    $region34: #{tpu_custom_call.1} parent=1 // pred_check
      _
    $region35: #{tpu_custom_call.1} parent=1 // pred_check_branch
      %646 = sbr.rel (0) target = $region37
    $region36: #{tpu_custom_call.1} parent=1 // pred_region
      %s648 = ssub.s32 128, 128
      %649 = vsyncadd [#allocation4], %s648
      %s651 = sshll.u32 [#allocation8], 4
      %s652 = int_to_ptr.vmem [resolvable:$true] %s651
      %654 = dma.vmem_to_hbm [thread:$0]  %s652, 128, %s5, [#allocation4]
    $region37: #{tpu_custom_call.1} parent=1 // pred_fallthru
      _
    // Predicated region
    $region38: #{tpu_custom_call.1} parent=1 // pred_check
      _
    $region39: #{tpu_custom_call.1} parent=1 // pred_check_branch
      %656 = sbr.rel (0) target = $region41
    $region40: #{tpu_custom_call.1} parent=1 // pred_region
      %657 = dma.done [#allocation4], 128
    $region41: #{tpu_custom_call.1} parent=1 // pred_fallthru
      _
    %658 = vsyncpa [#allocation3], 1
    %659 = vsyncpa [#allocation6], 1
    %660 = vsyncpa [#allocation4], 1

</llo_original>
